<compile_context>
chip_gen: v7x
topology: tpu7x:2x2x1
jax: 0.10.0
libtpu: 0.0.40
codegen_flags: <defaults>
</compile_context>

<pallas_src>
import functools

import jax
import jax.numpy as jnp
from jax import lax
from jax.experimental import pallas as pl
from jax.experimental.pallas import tpu as pltpu


def _round_up(n, m):
    return ((n + m - 1) // m) * m


def _cdiv(a, b):
    return (a + b - 1) // b


def _tpu_vmem_capacity_bytes():
    """Generation-aware VMEM capacity (128 MiB v5e/v6e, 64 MiB per-TC v7x)."""
    try:
        return int(pltpu.get_tpu_info().vmem_capacity_bytes)
    except Exception:
        return 64 * 1024 * 1024  # conservative fallback (v7x-sized)


# ----------------------------- kernels -------------------------------------


def _mlp_kernel_resident(x_ref, w_in_ref, b_in_ref, *rest, num_hidden, unroll):
    """All weights VMEM-resident.

    rest = (w_hid, b_hid, w_out, b_out, o, h) when num_hidden > 0
         = (w_out, b_out, o, h)               when num_hidden == 0
    """
    if num_hidden > 0:
        w_hid_ref, b_hid_ref, w_out_ref, b_out_ref, o_ref, h_ref = rest
    else:
        w_out_ref, b_out_ref, o_ref, h_ref = rest

    cdt = w_in_ref.dtype  # MXU compute dtype

    # Input layer: f32 accumulation + f32 epilogue (v5e-safe), cast at store.
    h = jnp.dot(x_ref[...].astype(cdt), w_in_ref[...],
                preferred_element_type=jnp.float32)
    h_ref[...] = jnp.maximum(h + b_in_ref[...], 0.0).astype(h_ref.dtype)

    if num_hidden > 0:
        def layer(l):
            a = jnp.dot(h_ref[...].astype(cdt), w_hid_ref[l],
                        preferred_element_type=jnp.float32)
            h_ref[...] = jnp.maximum(a + b_hid_ref[l], 0.0).astype(h_ref.dtype)

        if unroll:
            for l in range(num_hidden):
                layer(l)
        else:
            # Deep MLP: single loop body with bounded live ranges.
            def body(l, carry):
                layer(l)
                return carry
            lax.fori_loop(0, num_hidden, body, 0)

    y = jnp.dot(h_ref[...].astype(cdt), w_out_ref[...],
                preferred_element_type=jnp.float32)
    o_ref[...] = (y + b_out_ref[...]).astype(o_ref.dtype)


def _mlp_kernel_stream(x_ref, w_in_ref, b_in_ref, w_hid_hbm, b_hid_ref,
                       w_out_ref, b_out_ref, o_ref, h_ref, wbuf, sem,
                       *, num_hidden):
    """Hidden weights streamed from HBM (manual double-buffer, pattern P4)."""
    cdt = w_in_ref.dtype

    def fetch(l, slot):
        pltpu.make_async_copy(w_hid_hbm.at[l], wbuf.at[slot], sem.at[slot]).start()

    # Prefetch layer 0 behind the input-layer matmul.
    fetch(0, 0)

    h = jnp.dot(x_ref[...].astype(cdt), w_in_ref[...],
                preferred_element_type=jnp.float32)
    h_ref[...] = jnp.maximum(h + b_in_ref[...], 0.0).astype(h_ref.dtype)

    def body(l, carry):
        slot = lax.rem(l, 2)
        pltpu.make_async_copy(w_hid_hbm.at[0], wbuf.at[slot], sem.at[slot]).wait()

        @pl.when(l + 1 < num_hidden)
        def _():
            fetch(l + 1, 1 - slot)

        a = jnp.dot(h_ref[...].astype(cdt), wbuf[slot],
                    preferred_element_type=jnp.float32)
        h_ref[...] = jnp.maximum(a + b_hid_ref[l], 0.0).astype(h_ref.dtype)
        return carry

    lax.fori_loop(0, num_hidden, body, 0)

    y = jnp.dot(h_ref[...].astype(cdt), w_out_ref[...],
                preferred_element_type=jnp.float32)
    o_ref[...] = (y + b_out_ref[...]).astype(o_ref.dtype)


# ------------------------------ wrapper -------------------------------------


class MultiLayerLinearPallas:
    """JAX/Pallas re-implementation of the PyTorch MultiLayerLinear module."""

    def __init__(self, input_dim, hidden_dim, output_dim, layers_num, key,
                 param_dtype=jnp.bfloat16, act_dtype=None):
        self.input_dim = input_dim
        self.hidden_dim = hidden_dim
        self.output_dim = output_dim
        self.layers_num = layers_num
        self.param_dtype = param_dtype
        # Activation scratch dtype; use jnp.float32 when accuracy matters.
        self.act_dtype = param_dtype if act_dtype is None else act_dtype

        # Lane-dense padded feature dims (multiples of 128).
        self.in_p = _round_up(input_dim, 128)
        self.hid_p = _round_up(hidden_dim, 128)
        self.out_p = _round_up(output_dim, 128)

        # torch.nn.Linear-style init: U(-1/sqrt(fan_in), 1/sqrt(fan_in)).
        dims = [(input_dim, hidden_dim)]
        dims += [(hidden_dim, hidden_dim)] * layers_num
        dims += [(hidden_dim, output_dim)]

        self.params = []  # unpadded f32 masters (weight stored as (in, out))
        for fan_in, fan_out in dims:
            key, kw, kb = jax.random.split(key, 3)
            bound = 1.0 / float(fan_in) ** 0.5
            w_t = jax.random.uniform(kw, (fan_in, fan_out), jnp.float32,
                                     minval=-bound, maxval=bound)
            b = jax.random.uniform(kb, (1, fan_out), jnp.float32,
                                   minval=-bound, maxval=bound)
            self.params.append((w_t, b))

        pd = param_dtype
        w_in, b_in = self.params[0]
        self.w_in = (jnp.zeros((self.in_p, self.hid_p), pd)
                     .at[:input_dim, :hidden_dim].set(w_in.astype(pd)))
        self.b_in = (jnp.zeros((1, self.hid_p), jnp.float32)
                     .at[:, :hidden_dim].set(b_in))

        if layers_num > 0:
            w_hid = jnp.zeros((layers_num, self.hid_p, self.hid_p), pd)
            b_hid = jnp.zeros((layers_num, 1, self.hid_p), jnp.float32)
            for l in range(layers_num):
                w_l, b_l = self.params[1 + l]
                w_hid = w_hid.at[l, :hidden_dim, :hidden_dim].set(w_l.astype(pd))
                b_hid = b_hid.at[l, :, :hidden_dim].set(b_l)
            self.w_hid, self.b_hid = w_hid, b_hid
        else:
            # No dummy zero stack is ever shipped when layers_num == 0.
            self.w_hid = self.b_hid = None

        w_out, b_out = self.params[-1]
        self.w_out = (jnp.zeros((self.hid_p, self.out_p), pd)
                      .at[:hidden_dim, :output_dim].set(w_out.astype(pd)))
        self.b_out = (jnp.zeros((1, self.out_p), jnp.float32)
                      .at[:, :output_dim].set(b_out))

    # ---- VMEM bookkeeping -------------------------------------------------

    def _vmem_estimates(self, tb, x_itemsize):
        """(resident_estimate, streaming_estimate) in bytes."""
        p_it = jnp.dtype(self.param_dtype).itemsize
        a_it = jnp.dtype(self.act_dtype).itemsize
        L = self.layers_num

        fixed = ((self.in_p * self.hid_p + self.hid_p * self.out_p) * p_it  # w_in, w_out (Buffered(1))
                 + (self.hid_p + self.out_p + L * self.hid_p) * 4           # biases (f32, Buffered(1))
                 + 2 * tb * self.in_p * x_itemsize                          # x tile, double-buffered
                 + 2 * tb * self.out_p * x_itemsize                         # out tile, double-buffered
                 + tb * self.hid_p * a_it)                                  # activation scratch
        w_hid_bytes = L * self.hid_p * self.hid_p * p_it
        resident_est = int((fixed + w_hid_bytes) * 1.25) + (1 << 20)
        stream_est = int((fixed + 2 * self.hid_p * self.hid_p * p_it) * 1.25) + (1 << 20)
        return resident_est, stream_est

    # ---- forward ------------------------------------------------------------

    def __call__(self, x, *, force_stream=None):
        B, In = x.shape
        assert In == self.input_dim, (In, self.input_dim)

        # Batch tiling: 16-row alignment for sub-32-bit tiles, balanced tiles
        # for large B, >=2 tiles for moderate B (keeps v7x's 2nd TC busy).
        min_it = min(jnp.dtype(self.act_dtype).itemsize, x.dtype.itemsize)
        row_align = 16 if min_it < 4 else 8
        if B > 512:
            n_tiles = _cdiv(B, 512)
        elif B >= 256:
            n_tiles = 2
        else:
            n_tiles = 1
        tb = _round_up(_cdiv(B, n_tiles), row_align)
        b_p = tb * n_tiles

        # Pad x only when needed; the compute-dtype cast happens in-kernel.
        if b_p == B and self.in_p == In:
            x_p = x
        else:
            x_p = jnp.pad(x, ((0, b_p - B), (0, self.in_p - In)))

        # Generation-aware VMEM plan + streaming decision.
        budget = int(_tpu_vmem_capacity_bytes() * 0.85)
        res_est, str_est = self._vmem_estimates(tb, x.dtype.itemsize)
        if force_stream is None:
            stream = (self.layers_num > 0) and (res_est > budget)
        else:
            stream = bool(force_stream) and (self.layers_num > 0)
        vmem_limit = int(min(max(str_est if stream else res_est, 4 << 20), budget))

        L = self.layers_num
        # Constant-index (weight/bias) blocks are single-buffered.
        resident_spec = functools.partial(pl.BlockSpec,
                                          pipeline_mode=pl.Buffered(1))

        in_specs = [
            pl.BlockSpec((tb, self.in_p), lambda i: (i, 0)),                 # x tile
            resident_spec((self.in_p, self.hid_p), lambda i: (0, 0)),        # w_in
            resident_spec((1, self.hid_p), lambda i: (0, 0)),                # b_in
        ]
        operands = [x_p, self.w_in, self.b_in]
        if L > 0:
            if stream:
                in_specs.append(pl.BlockSpec(memory_space=pl.ANY))           # w_hid (HBM)
            else:
                in_specs.append(resident_spec((L, self.hid_p, self.hid_p),
                                              lambda i: (0, 0, 0)))          # w_hid
            in_specs.append(resident_spec((L, 1, self.hid_p),
                                          lambda i: (0, 0, 0)))              # b_hid
            operands += [self.w_hid, self.b_hid]
        in_specs += [
            resident_spec((self.hid_p, self.out_p), lambda i: (0, 0)),       # w_out
            resident_spec((1, self.out_p), lambda i: (0, 0)),                # b_out
        ]
        operands += [self.w_out, self.b_out]

        scratch_shapes = [pltpu.VMEM((tb, self.hid_p), self.act_dtype)]
        if stream:
            scratch_shapes += [
                pltpu.VMEM((2, self.hid_p, self.hid_p), self.param_dtype),
                pltpu.SemaphoreType.DMA((2,)),
            ]
            kernel = functools.partial(_mlp_kernel_stream, num_hidden=L)
        else:
            kernel = functools.partial(_mlp_kernel_resident, num_hidden=L,
                                       unroll=(L <= 4))

        flops = 2 * b_p * (self.in_p * self.hid_p
                           + L * self.hid_p * self.hid_p
                           + self.hid_p * self.out_p)
        w_bytes = sum(int(op.size) * op.dtype.itemsize for op in operands[1:])
        bytes_accessed = (int(x_p.size) * x_p.dtype.itemsize + w_bytes
                          + b_p * self.out_p * x.dtype.itemsize)

        out_padded = pl.pallas_call(
            kernel,
            out_shape=jax.ShapeDtypeStruct((b_p, self.out_p), x.dtype),
            grid_spec=pltpu.PrefetchScalarGridSpec(
                num_scalar_prefetch=0,
                grid=(n_tiles,),
                in_specs=in_specs,
                out_specs=pl.BlockSpec((tb, self.out_p), lambda i: (i, 0)),
                scratch_shapes=scratch_shapes,
            ),
            compiler_params=pltpu.CompilerParams(
                dimension_semantics=("parallel",),
                vmem_limit_bytes=vmem_limit,
            ),
            cost_estimate=pl.CostEstimate(
                flops=flops, transcendentals=0, bytes_accessed=bytes_accessed),
        )(*operands)

        return out_padded[:B, :self.output_dim]


def _reference_forward(params, x):
    y = x
    n = len(params)
    for i, (w_t, b) in enumerate(params):
        y = y @ w_t + b
        if i != n - 1:
            y = jnp.maximum(y, 0.0)
    return y


if __name__ == "__main__":
    key = jax.random.PRNGKey(0)
    key, k_model, k_in = jax.random.split(key, 3)

    batch, input_dim, hidden_dim, output_dim, layers_num = 8, 16, 32, 8, 2
    x = jax.random.normal(k_in, (batch, input_dim), jnp.float32)

    # 1) f32, weight-resident path: exact check vs JAX reference.
    m_f32 = MultiLayerLinearPallas(input_dim, hidden_dim, output_dim,
                                   layers_num, k_model, param_dtype=jnp.float32)
    ref = _reference_forward(m_f32.params, x)
    out = jax.block_until_ready(m_f32(x))
    assert out.shape == (batch, output_dim), out.shape
    assert jnp.allclose(out, ref, atol=1e-5, rtol=1e-5), "f32 resident mismatch"

    # 2) f32, forced hidden-weight streaming path (HBM + manual double-buffer).
    out_s = jax.block_until_ready(m_f32(x, force_stream=True))
    assert jnp.allclose(out_s, ref, atol=1e-5, rtol=1e-5), "f32 streaming mismatch"

    # 3) bf16 params (default perf config): loose check vs the f32 reference.
    m_bf16 = MultiLayerLinearPallas(input_dim, hidden_dim, output_dim,
                                    layers_num, k_model, param_dtype=jnp.bfloat16)
    out_b = jax.block_until_ready(m_bf16(x))
    assert out_b.shape == (batch, output_dim), out_b.shape
    assert jnp.allclose(out_b, ref, atol=5e-2, rtol=5e-2), "bf16 mismatch"

    # 4) layers_num == 0 (no hidden-weight operand shipped at all).
    m0 = MultiLayerLinearPallas(input_dim, hidden_dim, output_dim, 0, k_model,
                                param_dtype=jnp.float32)
    ref0 = _reference_forward(m0.params, x)
    out0 = jax.block_until_ready(m0(x))
    assert jnp.allclose(out0, ref0, atol=1e-5, rtol=1e-5), "layers_num=0 mismatch"

    # 5) deep MLP -> lax.fori_loop body (bounded live ranges).
    m6 = MultiLayerLinearPallas(input_dim, hidden_dim, output_dim, 6, k_model,
                                param_dtype=jnp.float32)
    ref6 = _reference_forward(m6.params, x)
    out6 = jax.block_until_ready(m6(x))
    assert jnp.allclose(out6, ref6, atol=1e-5, rtol=1e-5), "deep fori mismatch"

    print("KERNEL_OK")
</pallas_src>

<mosaic_0001>
module attributes {stable_mosaic.version = 11 : i64} {
  func.func @_mlp_kernel_resident(%arg0: i32, %arg1: memref<8x128xf32, #tpu.memory_space<vmem>>, %arg2: memref<128x128xf32, #tpu.memory_space<vmem>>, %arg3: memref<1x128xf32, #tpu.memory_space<vmem>>, %arg4: memref<2x128x128xf32, #tpu.memory_space<vmem>>, %arg5: memref<2x1x128xf32, #tpu.memory_space<vmem>>, %arg6: memref<128x128xf32, #tpu.memory_space<vmem>>, %arg7: memref<1x128xf32, #tpu.memory_space<vmem>>, %arg8: memref<8x128xf32, #tpu.memory_space<vmem>>, %arg9: memref<8x128xf32, #tpu.memory_space<vmem>>) attributes {dimension_semantics = [#tpu.dimension_semantics<parallel>], iteration_bounds = array<i64: 1>, scalar_prefetch = 0 : i64, scratch_operands = 1 : i64, tpu.core_type = #tpu.core_type<tc>, window_params = [{transform_indices = @transform_0, window_bounds = array<i64: 8, 128>}, {pipeline_mode = #tpu.pipeline_mode<synchronous>, transform_indices = @transform_1, window_bounds = array<i64: 128, 128>}, {pipeline_mode = #tpu.pipeline_mode<synchronous>, transform_indices = @transform_2, window_bounds = array<i64: 1, 128>}, {pipeline_mode = #tpu.pipeline_mode<synchronous>, transform_indices = @transform_3, window_bounds = array<i64: 2, 128, 128>}, {pipeline_mode = #tpu.pipeline_mode<synchronous>, transform_indices = @transform_4, window_bounds = array<i64: 2, 1, 128>}, {pipeline_mode = #tpu.pipeline_mode<synchronous>, transform_indices = @transform_5, window_bounds = array<i64: 128, 128>}, {pipeline_mode = #tpu.pipeline_mode<synchronous>, transform_indices = @transform_6, window_bounds = array<i64: 1, 128>}, {transform_indices = @transform_7, window_bounds = array<i64: 8, 128>}]} {
    %c0 = arith.constant 0 : index
    %c0_0 = arith.constant 0 : index
    %0 = vector.load %arg1[%c0, %c0_0] : memref<8x128xf32, #tpu.memory_space<vmem>>, vector<8x128xf32>
    %c0_1 = arith.constant 0 : index
    %c0_2 = arith.constant 0 : index
    %1 = vector.load %arg2[%c0_1, %c0_2] : memref<128x128xf32, #tpu.memory_space<vmem>>, vector<128x128xf32>
    %cst = arith.constant dense<0.000000e+00> : vector<8x128xf32>
    %2 = tpu.matmul %0, %1, %cst {dimension_numbers = #tpu.dot_dimension_numbers<[1], [0], [0], [1], [0, 0, 1, 1], [], []>} : vector<8x128xf32>, vector<128x128xf32>, vector<8x128xf32> -> vector<8x128xf32>
    %c0_3 = arith.constant 0 : index
    %c0_4 = arith.constant 0 : index
    %3 = vector.load %arg3[%c0_3, %c0_4] : memref<1x128xf32, #tpu.memory_space<vmem>>, vector<1x128xf32>
    %4 = vector.broadcast %3 : vector<1x128xf32> to vector<8x128xf32>
    %5 = arith.addf %2, %4 : vector<8x128xf32>
    %cst_5 = arith.constant 0.000000e+00 : f32
    %6 = vector.broadcast %cst_5 : f32 to vector<8x128xf32>
    %7 = arith.maximumf %5, %6 : vector<8x128xf32>
    %c0_6 = arith.constant 0 : index
    %c0_7 = arith.constant 0 : index
    %8 = vector.load %arg9[%c0_6, %c0_7] : memref<8x128xf32, #tpu.memory_space<vmem>>, vector<8x128xf32>
    tpu.vector_store %arg9[%c0_6, %c0_7], %7 {strides = array<i32>} : memref<8x128xf32, #tpu.memory_space<vmem>>, vector<8x128xf32>,
    %c0_8 = arith.constant 0 : index
    %c0_9 = arith.constant 0 : index
    %9 = vector.load %arg9[%c0_8, %c0_9] : memref<8x128xf32, #tpu.memory_space<vmem>>, vector<8x128xf32>
    %c0_10 = arith.constant 0 : index
    %c0_11 = arith.constant 0 : index
    %c0_12 = arith.constant 0 : index
    %10 = vector.load %arg4[%c0_10, %c0_11, %c0_12] : memref<2x128x128xf32, #tpu.memory_space<vmem>>, vector<1x128x128xf32>
    %11 = vector.shape_cast %10 : vector<1x128x128xf32> to vector<128x128xf32>
    %cst_13 = arith.constant dense<0.000000e+00> : vector<8x128xf32>
    %12 = tpu.matmul %9, %11, %cst_13 {dimension_numbers = #tpu.dot_dimension_numbers<[1], [0], [0], [1], [0, 0, 1, 1], [], []>} : vector<8x128xf32>, vector<128x128xf32>, vector<8x128xf32> -> vector<8x128xf32>
    %c0_14 = arith.constant 0 : index
    %c0_15 = arith.constant 0 : index
    %c0_16 = arith.constant 0 : index
    %13 = vector.load %arg5[%c0_14, %c0_15, %c0_16] : memref<2x1x128xf32, #tpu.memory_space<vmem>>, vector<1x1x128xf32>
    %14 = vector.shape_cast %13 : vector<1x1x128xf32> to vector<1x128xf32>
    %15 = vector.broadcast %14 : vector<1x128xf32> to vector<8x128xf32>
    %16 = arith.addf %12, %15 : vector<8x128xf32>
    %cst_17 = arith.constant 0.000000e+00 : f32
    %17 = vector.broadcast %cst_17 : f32 to vector<8x128xf32>
    %18 = arith.maximumf %16, %17 : vector<8x128xf32>
    %c0_18 = arith.constant 0 : index
    %c0_19 = arith.constant 0 : index
    %19 = vector.load %arg9[%c0_18, %c0_19] : memref<8x128xf32, #tpu.memory_space<vmem>>, vector<8x128xf32>
    tpu.vector_store %arg9[%c0_18, %c0_19], %18 {strides = array<i32>} : memref<8x128xf32, #tpu.memory_space<vmem>>, vector<8x128xf32>,
    %c0_20 = arith.constant 0 : index
    %c0_21 = arith.constant 0 : index
    %20 = vector.load %arg9[%c0_20, %c0_21] : memref<8x128xf32, #tpu.memory_space<vmem>>, vector<8x128xf32>
    %c1 = arith.constant 1 : index
    %c0_22 = arith.constant 0 : index
    %c0_23 = arith.constant 0 : index
    %21 = vector.load %arg4[%c1, %c0_22, %c0_23] : memref<2x128x128xf32, #tpu.memory_space<vmem>>, vector<1x128x128xf32>
    %22 = vector.shape_cast %21 : vector<1x128x128xf32> to vector<128x128xf32>
    %cst_24 = arith.constant dense<0.000000e+00> : vector<8x128xf32>
    %23 = tpu.matmul %20, %22, %cst_24 {dimension_numbers = #tpu.dot_dimension_numbers<[1], [0], [0], [1], [0, 0, 1, 1], [], []>} : vector<8x128xf32>, vector<128x128xf32>, vector<8x128xf32> -> vector<8x128xf32>
    %c1_25 = arith.constant 1 : index
    %c0_26 = arith.constant 0 : index
    %c0_27 = arith.constant 0 : index
    %24 = vector.load %arg5[%c1_25, %c0_26, %c0_27] : memref<2x1x128xf32, #tpu.memory_space<vmem>>, vector<1x1x128xf32>
    %25 = vector.shape_cast %24 : vector<1x1x128xf32> to vector<1x128xf32>
    %26 = vector.broadcast %25 : vector<1x128xf32> to vector<8x128xf32>
    %27 = arith.addf %23, %26 : vector<8x128xf32>
    %cst_28 = arith.constant 0.000000e+00 : f32
    %28 = vector.broadcast %cst_28 : f32 to vector<8x128xf32>
    %29 = arith.maximumf %27, %28 : vector<8x128xf32>
    %c0_29 = arith.constant 0 : index
    %c0_30 = arith.constant 0 : index
    %30 = vector.load %arg9[%c0_29, %c0_30] : memref<8x128xf32, #tpu.memory_space<vmem>>, vector<8x128xf32>
    tpu.vector_store %arg9[%c0_29, %c0_30], %29 {strides = array<i32>} : memref<8x128xf32, #tpu.memory_space<vmem>>, vector<8x128xf32>,
    %c0_31 = arith.constant 0 : index
    %c0_32 = arith.constant 0 : index
    %31 = vector.load %arg9[%c0_31, %c0_32] : memref<8x128xf32, #tpu.memory_space<vmem>>, vector<8x128xf32>
    %c0_33 = arith.constant 0 : index
    %c0_34 = arith.constant 0 : index
    %32 = vector.load %arg6[%c0_33, %c0_34] : memref<128x128xf32, #tpu.memory_space<vmem>>, vector<128x128xf32>
    %cst_35 = arith.constant dense<0.000000e+00> : vector<8x128xf32>
    %33 = tpu.matmul %31, %32, %cst_35 {dimension_numbers = #tpu.dot_dimension_numbers<[1], [0], [0], [1], [0, 0, 1, 1], [], []>} : vector<8x128xf32>, vector<128x128xf32>, vector<8x128xf32> -> vector<8x128xf32>
    %c0_36 = arith.constant 0 : index
    %c0_37 = arith.constant 0 : index
    %34 = vector.load %arg7[%c0_36, %c0_37] : memref<1x128xf32, #tpu.memory_space<vmem>>, vector<1x128xf32>
    %35 = vector.broadcast %34 : vector<1x128xf32> to vector<8x128xf32>
    %36 = arith.addf %33, %35 : vector<8x128xf32>
    %c0_38 = arith.constant 0 : index
    %c0_39 = arith.constant 0 : index
    %37 = vector.load %arg8[%c0_38, %c0_39] : memref<8x128xf32, #tpu.memory_space<vmem>>, vector<8x128xf32>
    tpu.vector_store %arg8[%c0_38, %c0_39], %36 {strides = array<i32>} : memref<8x128xf32, #tpu.memory_space<vmem>>, vector<8x128xf32>,
    return
  }
  func.func @transform_0(%arg0: i32) -> (i32, i32) {
    %c0_i32 = arith.constant 0 : i32
    %c0_i32_0 = arith.constant 0 : i32
    return %arg0, %c0_i32 : i32, i32
  }
  func.func @transform_1(%arg0: i32) -> (i32, i32) {
    %c0_i32 = arith.constant 0 : i32
    %c0_i32_0 = arith.constant 0 : i32
    %c0_i32_1 = arith.constant 0 : i32
    return %c0_i32, %c0_i32_0 : i32, i32
  }
  func.func @transform_2(%arg0: i32) -> (i32, i32) {
    %c0_i32 = arith.constant 0 : i32
    %c0_i32_0 = arith.constant 0 : i32
    %c0_i32_1 = arith.constant 0 : i32
    return %c0_i32, %c0_i32_0 : i32, i32
  }
  func.func @transform_3(%arg0: i32) -> (i32, i32, i32) {
    %c0_i32 = arith.constant 0 : i32
    %c0_i32_0 = arith.constant 0 : i32
    %c0_i32_1 = arith.constant 0 : i32
    %c0_i32_2 = arith.constant 0 : i32
    return %c0_i32, %c0_i32_0, %c0_i32_1 : i32, i32, i32
  }
  func.func @transform_4(%arg0: i32) -> (i32, i32, i32) {
    %c0_i32 = arith.constant 0 : i32
    %c0_i32_0 = arith.constant 0 : i32
    %c0_i32_1 = arith.constant 0 : i32
    %c0_i32_2 = arith.constant 0 : i32
    return %c0_i32, %c0_i32_0, %c0_i32_1 : i32, i32, i32
  }
  func.func @transform_5(%arg0: i32) -> (i32, i32) {
    %c0_i32 = arith.constant 0 : i32
    %c0_i32_0 = arith.constant 0 : i32
    %c0_i32_1 = arith.constant 0 : i32
    return %c0_i32, %c0_i32_0 : i32, i32
  }
  func.func @transform_6(%arg0: i32) -> (i32, i32) {
    %c0_i32 = arith.constant 0 : i32
    %c0_i32_0 = arith.constant 0 : i32
    %c0_i32_1 = arith.constant 0 : i32
    return %c0_i32, %c0_i32_0 : i32, i32
  }
  func.func @transform_7(%arg0: i32) -> (i32, i32) {
    %c0_i32 = arith.constant 0 : i32
    %c0_i32_0 = arith.constant 0 : i32
    return %arg0, %c0_i32 : i32, i32
  }
}

</mosaic_0001>

<llo_original>
// kernel: tpu_custom_call.1
$region0: #{tpu_custom_call.1}
  #allocation0 [shape = 'u32[]', space=smem, size = 0x4, offset = 0x4, fixed_abs, tag = 'smem constant byte address 0x4 - core index']
  #allocation1 [shape = 'u32[144,128]{1,0:T(1,128)}', space=vmem, size = 0x12000, scoped, tag = 'internal scratch']
  #allocation2 [shape = 'f32[8,128]{1,0:T(8,128)}', space=vmem, size = 0x1000, scoped, tag = 'scratch operand']
  %s0 = inlined_call_operand.hbm [shape: f32[8,128], index: 0, kind: input, shape index: {}]
  %s1 = inlined_call_operand.hbm [shape: f32[128,128], index: 1, kind: input, shape index: {}]
  %s2 = inlined_call_operand.vmem [shape: f32[1,128], index: 2, kind: input, shape index: {}]
  %s3 = inlined_call_operand.hbm [shape: f32[2,128,128], index: 3, kind: input, shape index: {}]
  %s4 = inlined_call_operand.vmem [shape: f32[2,1,128], index: 4, kind: input, shape index: {}]
  %s5 = inlined_call_operand.hbm [shape: f32[128,128], index: 5, kind: input, shape index: {}]
  %s6 = inlined_call_operand.vmem [shape: f32[1,128], index: 6, kind: input, shape index: {}]
  %s7 = inlined_call_operand.hbm [shape: f32[8,128], index: 7, kind: output, shape index: {}]
  %s8 = sld [smem:[#allocation0]]
  $region54: #{tpu_custom_call.1} parent=0
    _
  %s10 = ssub.s32 1, %s8
  %s11 = scalar_select 0, %s10, %s8
  $region1: #{tpu_custom_call.1} parent=0
    #allocation3 [shape = 'u8[4096]{0}', space=vmem, size = 0x1000, scoped, tag = 'input window, operand 0, single buffered']
    #allocation4 [shape = 's32[1]{0}', space=sflag, size = 0x4, scoped, tag = 'scoped memory for tpu_custom_call.1']
    #allocation5 [shape = 's32[1]{0}', space=sflag, size = 0x4, scoped, tag = 'scoped memory for tpu_custom_call.1']
    #allocation6 [shape = 'u8[65536]{0}', space=vmem, size = 0x10000, scoped, tag = 'input window, operand 1, single buffered']
    #allocation7 [shape = 's32[1]{0}', space=sflag, size = 0x4, scoped, tag = 'scoped memory for tpu_custom_call.1']
    #allocation8 [shape = 'u8[131072]{0}', space=vmem, size = 0x20000, scoped, tag = 'input window, operand 3, single buffered']
    #allocation9 [shape = 'u8[65536]{0}', space=vmem, size = 0x10000, scoped, tag = 'input window, operand 5, single buffered']
    #allocation10 [shape = 's32[1]{0}', space=sflag, size = 0x4, scoped, tag = 'scoped memory for tpu_custom_call.1']
    #allocation11 [shape = 'u8[4096]{0}', space=vmem, size = 0x1000, scoped, tag = 'output window, operand 0, single buffered']
    %12 = vsyncpa [#allocation4], 0
    %13 = vsyncpa [#allocation7], 0
    %14 = vsyncpa [#allocation10], 0
    %15 = vsyncpa [#allocation5], 0
    // Predicated region
    $region2: #{tpu_custom_call.1} parent=1 // pred_check
      _
    $region3: #{tpu_custom_call.1} parent=1 // pred_check_branch
      %17 = sbr.rel (0) target = $region5
    $region4: #{tpu_custom_call.1} parent=1 // pred_region
      %s19 = ssub.s32 128, 128
      %20 = vsyncadd [#allocation4], %s19
      %s22 = sshll.u32 [#allocation3], 4
      %s23 = int_to_ptr.vmem [resolvable:$true] %s22
      %25 = dma.hbm_to_vmem [thread:$0]  %s0, 128, %s23, [#allocation4]
    $region5: #{tpu_custom_call.1} parent=1 // pred_fallthru
      _
    // Predicated region
    $region6: #{tpu_custom_call.1} parent=1 // pred_check
      _
    $region7: #{tpu_custom_call.1} parent=1 // pred_check_branch
      %27 = sbr.rel (0) target = $region9
    $region8: #{tpu_custom_call.1} parent=1 // pred_region
      %s29 = ssub.s32 2048, 2048
      %30 = vsyncadd [#allocation7], %s29
      %s31 = sshll.u32 [#allocation6], 4
      %s32 = int_to_ptr.vmem [resolvable:$true] %s31
      %37 = dma.hbm_to_vmem [thread:$0]  %s1, 2048, %s32, [#allocation7], 128, 128, 8
    $region9: #{tpu_custom_call.1} parent=1 // pred_fallthru
      _
    // Predicated region
    $region10: #{tpu_custom_call.1} parent=1 // pred_check
      _
    $region11: #{tpu_custom_call.1} parent=1 // pred_check_branch
      %39 = sbr.rel (0) target = $region13
    $region12: #{tpu_custom_call.1} parent=1 // pred_region
      _
    $region13: #{tpu_custom_call.1} parent=1 // pred_fallthru
      _
    // Predicated region
    $region14: #{tpu_custom_call.1} parent=1 // pred_check
      _
    $region15: #{tpu_custom_call.1} parent=1 // pred_check_branch
      %41 = sbr.rel (0) target = $region17
    $region16: #{tpu_custom_call.1} parent=1 // pred_region
      %s43 = ssub.s32 4096, 4096
      %44 = vsyncadd [#allocation7], %s43
      %s45 = sshll.u32 [#allocation8], 4
      %s46 = int_to_ptr.vmem [resolvable:$true] %s45
      %51 = dma.hbm_to_vmem [thread:$0]  %s3, 4096, %s46, [#allocation7], 128, 128, 8
    $region17: #{tpu_custom_call.1} parent=1 // pred_fallthru
      _
    // Predicated region
    $region18: #{tpu_custom_call.1} parent=1 // pred_check
      _
    $region19: #{tpu_custom_call.1} parent=1 // pred_check_branch
      %53 = sbr.rel (0) target = $region21
    $region20: #{tpu_custom_call.1} parent=1 // pred_region
      _
    $region21: #{tpu_custom_call.1} parent=1 // pred_fallthru
      _
    // Predicated region
    $region22: #{tpu_custom_call.1} parent=1 // pred_check
      _
    $region23: #{tpu_custom_call.1} parent=1 // pred_check_branch
      %55 = sbr.rel (0) target = $region25
    $region24: #{tpu_custom_call.1} parent=1 // pred_region
      %s57 = ssub.s32 2048, 2048
      %58 = vsyncadd [#allocation10], %s57
      %s59 = sshll.u32 [#allocation9], 4
      %s60 = int_to_ptr.vmem [resolvable:$true] %s59
      %65 = dma.hbm_to_vmem [thread:$0]  %s5, 2048, %s60, [#allocation10], 128, 128, 8
    $region25: #{tpu_custom_call.1} parent=1 // pred_fallthru
      _
    // Predicated region
    $region26: #{tpu_custom_call.1} parent=1 // pred_check
      _
    $region27: #{tpu_custom_call.1} parent=1 // pred_check_branch
      %67 = sbr.rel (0) target = $region29
    $region28: #{tpu_custom_call.1} parent=1 // pred_region
      _
    $region29: #{tpu_custom_call.1} parent=1 // pred_fallthru
      _
    // Predicated region
    $region30: #{tpu_custom_call.1} parent=1 // pred_check
      _
    $region31: #{tpu_custom_call.1} parent=1 // pred_check_branch
      %69 = sbr.rel (0) target = $region33
    $region32: #{tpu_custom_call.1} parent=1 // pred_region
      %70 = dma.done [#allocation4], 128
    $region33: #{tpu_custom_call.1} parent=1 // pred_fallthru
      _
    // Predicated region
    $region34: #{tpu_custom_call.1} parent=1 // pred_check
      _
    $region35: #{tpu_custom_call.1} parent=1 // pred_check_branch
      %72 = sbr.rel (0) target = $region37
    $region36: #{tpu_custom_call.1} parent=1 // pred_region
      %73 = dma.done [#allocation7], 2048
    $region37: #{tpu_custom_call.1} parent=1 // pred_fallthru
      _
    // Predicated region
    $region38: #{tpu_custom_call.1} parent=1 // pred_check
      _
    $region39: #{tpu_custom_call.1} parent=1 // pred_check_branch
      %75 = sbr.rel (0) target = $region41
    $region40: #{tpu_custom_call.1} parent=1 // pred_region
      %76 = dma.done [#allocation7], 4096
    $region41: #{tpu_custom_call.1} parent=1 // pred_fallthru
      _
    // Predicated region
    $region42: #{tpu_custom_call.1} parent=1 // pred_check
      _
    $region43: #{tpu_custom_call.1} parent=1 // pred_check_branch
      %78 = sbr.rel (0) target = $region45
    $region44: #{tpu_custom_call.1} parent=1 // pred_region
      %79 = dma.done [#allocation10], 2048
    $region45: #{tpu_custom_call.1} parent=1 // pred_fallthru
      _
    %v80 = vld [vmem:[#allocation3] sm:$0xff]
    %v81 = vld [vmem:[#allocation6] sm:$0xff]
    %v82 = vld [vmem:[#allocation6 + $0x8] sm:$0xff]
    %v83 = vld [vmem:[#allocation6 + $0x10] sm:$0xff]
    %v84 = vld [vmem:[#allocation6 + $0x18] sm:$0xff]
    %v85 = vld [vmem:[#allocation6 + $0x20] sm:$0xff]
    %v86 = vld [vmem:[#allocation6 + $0x28] sm:$0xff]
    %v87 = vld [vmem:[#allocation6 + $0x30] sm:$0xff]
    %v88 = vld [vmem:[#allocation6 + $0x38] sm:$0xff]
    %v89 = vld [vmem:[#allocation6 + $0x40] sm:$0xff]
    %v90 = vld [vmem:[#allocation6 + $0x48] sm:$0xff]
    %v91 = vld [vmem:[#allocation6 + $0x50] sm:$0xff]
    %v92 = vld [vmem:[#allocation6 + $0x58] sm:$0xff]
    %v93 = vld [vmem:[#allocation6 + $0x60] sm:$0xff]
    %v94 = vld [vmem:[#allocation6 + $0x68] sm:$0xff]
    %v95 = vld [vmem:[#allocation6 + $0x70] sm:$0xff]
    %v96 = vld [vmem:[#allocation6 + $0x78] sm:$0xff]
    %v97 = vld [vmem:[%s2] sm:$0x1]
    %v99 = vlaneseq
    %v100 = vshrl.u32 %v99, 7
    %v101 = vsub.s32 0, %v100
    %v102 = vrot.slane %v97, %v101
    %104 = vmatprep.subr.mxu0 0.0
    %105 = vmatpush1.msra.mxu0 %v81
    %106 = vmatprep.subr.mxu0 0.0
    %107 = vmatpush1.msra.mxu0 %v82
    %108 = vmatprep.subr.mxu0 0.0
    %109 = vmatpush1.msra.mxu0 %v83
    %110 = vmatprep.subr.mxu0 0.0
    %111 = vmatpush1.msra.mxu0 %v84
    %112 = vmatprep.subr.mxu0 0.0
    %113 = vmatpush1.msra.mxu0 %v85
    %114 = vmatprep.subr.mxu0 0.0
    %115 = vmatpush1.msra.mxu0 %v86
    %116 = vmatprep.subr.mxu0 0.0
    %117 = vmatpush1.msra.mxu0 %v87
    %118 = vmatprep.subr.mxu0 0.0
    %119 = vmatpush1.msra.mxu0 %v88
    %120 = vmatprep.subr.mxu0 0.0
    %121 = vmatpush1.msra.mxu0 %v89
    %122 = vmatprep.subr.mxu0 0.0
    %123 = vmatpush1.msra.mxu0 %v90
    %124 = vmatprep.subr.mxu0 0.0
    %125 = vmatpush1.msra.mxu0 %v91
    %126 = vmatprep.subr.mxu0 0.0
    %127 = vmatpush1.msra.mxu0 %v92
    %128 = vmatprep.subr.mxu0 0.0
    %129 = vmatpush1.msra.mxu0 %v93
    %130 = vmatprep.subr.mxu0 0.0
    %131 = vmatpush1.msra.mxu0 %v94
    %132 = vmatprep.subr.mxu0 0.0
    %133 = vmatpush1.msra.mxu0 %v95
    %134 = vmatprep.subr.mxu0 0.0
    %135 = vmatpush1.msra.mxu0 %v96
    %136 = vmatprep.subr.mxu0 0.0
    %137 = vmatpush1.msra.mxu0 0.0
    %138 = vmatprep.subr.mxu0 0.0
    %139 = vmatpush1.msra.mxu0 0.0
    %140 = vmatprep.subr.mxu0 0.0
    %141 = vmatpush1.msra.mxu0 0.0
    %142 = vmatprep.subr.mxu0 0.0
    %143 = vmatpush1.msra.mxu0 0.0
    %144 = vmatprep.subr.mxu0 0.0
    %145 = vmatpush1.msra.mxu0 0.0
    %146 = vmatprep.subr.mxu0 0.0
    %147 = vmatpush1.msra.mxu0 0.0
    %148 = vmatprep.subr.mxu0 0.0
    %149 = vmatpush1.msra.mxu0 0.0
    %150 = vmatprep.subr.mxu0 0.0
    %151 = vmatpush1.msra.mxu0 0.0
    %152 = vmatprep.subr.mxu0 0.0
    %153 = vmatpush1.msra.mxu0 0.0
    %154 = vmatprep.subr.mxu0 0.0
    %155 = vmatpush1.msra.mxu0 0.0
    %156 = vmatprep.subr.mxu0 0.0
    %157 = vmatpush1.msra.mxu0 0.0
    %158 = vmatprep.subr.mxu0 0.0
    %159 = vmatpush1.msra.mxu0 0.0
    %160 = vmatprep.subr.mxu0 0.0
    %161 = vmatpush1.msra.mxu0 0.0
    %162 = vmatprep.subr.mxu0 0.0
    %163 = vmatpush1.msra.mxu0 0.0
    %164 = vmatprep.subr.mxu0 0.0
    %165 = vmatpush1.msra.mxu0 0.0
    %166 = vmatprep.subr.mxu0 0.0
    %167 = vmatpush1.msra.mxu0 0.0
    %168 = vmatprep.mubr.f32.mxu0 0.0
    %169 = vmatmul.mubr.f32.gmra.mrb[0].mxu0 %v80
    %v170 = vpop.f32.mrb[0].mxu0
    %v171 = vadd.f32 %v102, %v170
    %v172 = vpop.f32.mrb[0].mxu0
    %173 = vdwg.mxu0
    %v174 = vmax.f32 %v171, 0.0
    %175 = vst [vmem:[#allocation2] sm:$0xff] %v174
    %v176 = vld [vmem:[#allocation2] sm:$0xff]
    %v177 = vld [vmem:[#allocation8] sm:$0xff]
    %v178 = vld [vmem:[#allocation8 + $0x8] sm:$0xff]
    %v179 = vld [vmem:[#allocation8 + $0x10] sm:$0xff]
    %v180 = vld [vmem:[#allocation8 + $0x18] sm:$0xff]
    %v181 = vld [vmem:[#allocation8 + $0x20] sm:$0xff]
    %v182 = vld [vmem:[#allocation8 + $0x28] sm:$0xff]
    %v183 = vld [vmem:[#allocation8 + $0x30] sm:$0xff]
    %v184 = vld [vmem:[#allocation8 + $0x38] sm:$0xff]
    %v185 = vld [vmem:[#allocation8 + $0x40] sm:$0xff]
    %v186 = vld [vmem:[#allocation8 + $0x48] sm:$0xff]
    %v187 = vld [vmem:[#allocation8 + $0x50] sm:$0xff]
    %v188 = vld [vmem:[#allocation8 + $0x58] sm:$0xff]
    %v189 = vld [vmem:[#allocation8 + $0x60] sm:$0xff]
    %v190 = vld [vmem:[#allocation8 + $0x68] sm:$0xff]
    %v191 = vld [vmem:[#allocation8 + $0x70] sm:$0xff]
    %v192 = vld [vmem:[#allocation8 + $0x78] sm:$0xff]
    %v193 = vld [vmem:[%s4] sm:$0x1]
    %v195 = vlaneseq
    %v196 = vshrl.u32 %v195, 7
    %v197 = vsub.s32 0, %v196
    %v198 = vrot.slane %v193, %v197
    %200 = vmatprep.subr.mxu0 0.0
    %201 = vmatpush1.msra.mxu0 %v177
    %202 = vmatprep.subr.mxu0 0.0
    %203 = vmatpush1.msra.mxu0 %v178
    %204 = vmatprep.subr.mxu0 0.0
    %205 = vmatpush1.msra.mxu0 %v179
    %206 = vmatprep.subr.mxu0 0.0
    %207 = vmatpush1.msra.mxu0 %v180
    %208 = vmatprep.subr.mxu0 0.0
    %209 = vmatpush1.msra.mxu0 %v181
    %210 = vmatprep.subr.mxu0 0.0
    %211 = vmatpush1.msra.mxu0 %v182
    %212 = vmatprep.subr.mxu0 0.0
    %213 = vmatpush1.msra.mxu0 %v183
    %214 = vmatprep.subr.mxu0 0.0
    %215 = vmatpush1.msra.mxu0 %v184
    %216 = vmatprep.subr.mxu0 0.0
    %217 = vmatpush1.msra.mxu0 %v185
    %218 = vmatprep.subr.mxu0 0.0
    %219 = vmatpush1.msra.mxu0 %v186
    %220 = vmatprep.subr.mxu0 0.0
    %221 = vmatpush1.msra.mxu0 %v187
    %222 = vmatprep.subr.mxu0 0.0
    %223 = vmatpush1.msra.mxu0 %v188
    %224 = vmatprep.subr.mxu0 0.0
    %225 = vmatpush1.msra.mxu0 %v189
    %226 = vmatprep.subr.mxu0 0.0
    %227 = vmatpush1.msra.mxu0 %v190
    %228 = vmatprep.subr.mxu0 0.0
    %229 = vmatpush1.msra.mxu0 %v191
    %230 = vmatprep.subr.mxu0 0.0
    %231 = vmatpush1.msra.mxu0 %v192
    %232 = vmatprep.subr.mxu0 0.0
    %233 = vmatpush1.msra.mxu0 0.0
    %234 = vmatprep.subr.mxu0 0.0
    %235 = vmatpush1.msra.mxu0 0.0
    %236 = vmatprep.subr.mxu0 0.0
    %237 = vmatpush1.msra.mxu0 0.0
    %238 = vmatprep.subr.mxu0 0.0
    %239 = vmatpush1.msra.mxu0 0.0
    %240 = vmatprep.subr.mxu0 0.0
    %241 = vmatpush1.msra.mxu0 0.0
    %242 = vmatprep.subr.mxu0 0.0
    %243 = vmatpush1.msra.mxu0 0.0
    %244 = vmatprep.subr.mxu0 0.0
    %245 = vmatpush1.msra.mxu0 0.0
    %246 = vmatprep.subr.mxu0 0.0
    %247 = vmatpush1.msra.mxu0 0.0
    %248 = vmatprep.subr.mxu0 0.0
    %249 = vmatpush1.msra.mxu0 0.0
    %250 = vmatprep.subr.mxu0 0.0
    %251 = vmatpush1.msra.mxu0 0.0
    %252 = vmatprep.subr.mxu0 0.0
    %253 = vmatpush1.msra.mxu0 0.0
    %254 = vmatprep.subr.mxu0 0.0
    %255 = vmatpush1.msra.mxu0 0.0
    %256 = vmatprep.subr.mxu0 0.0
    %257 = vmatpush1.msra.mxu0 0.0
    %258 = vmatprep.subr.mxu0 0.0
    %259 = vmatpush1.msra.mxu0 0.0
    %260 = vmatprep.subr.mxu0 0.0
    %261 = vmatpush1.msra.mxu0 0.0
    %262 = vmatprep.subr.mxu0 0.0
    %263 = vmatpush1.msra.mxu0 0.0
    %264 = vmatprep.mubr.f32.mxu0 0.0
    %265 = vmatmul.mubr.f32.gmra.mrb[0].mxu0 %v176
    %v266 = vpop.f32.mrb[0].mxu0
    %v267 = vadd.f32 %v198, %v266
    %v268 = vpop.f32.mrb[0].mxu0
    %269 = vdwg.mxu0
    %v270 = vmax.f32 %v267, 0.0
    %271 = vst [vmem:[#allocation2] sm:$0xff] %v270
    %v272 = vld [vmem:[#allocation2] sm:$0xff]
    %s273 = scalar_lea.vmem [#allocation8], 128
    %v274 = vld [vmem:[%s273] sm:$0xff]
    %v275 = vld [vmem:[%s273 + $0x8] sm:$0xff]
    %v276 = vld [vmem:[%s273 + $0x10] sm:$0xff]
    %v277 = vld [vmem:[%s273 + $0x18] sm:$0xff]
    %v278 = vld [vmem:[%s273 + $0x20] sm:$0xff]
    %v279 = vld [vmem:[%s273 + $0x28] sm:$0xff]
    %v280 = vld [vmem:[%s273 + $0x30] sm:$0xff]
    %v281 = vld [vmem:[%s273 + $0x38] sm:$0xff]
    %v282 = vld [vmem:[%s273 + $0x40] sm:$0xff]
    %v283 = vld [vmem:[%s273 + $0x48] sm:$0xff]
    %v284 = vld [vmem:[%s273 + $0x50] sm:$0xff]
    %v285 = vld [vmem:[%s273 + $0x58] sm:$0xff]
    %v286 = vld [vmem:[%s273 + $0x60] sm:$0xff]
    %v287 = vld [vmem:[%s273 + $0x68] sm:$0xff]
    %v288 = vld [vmem:[%s273 + $0x70] sm:$0xff]
    %v289 = vld [vmem:[%s273 + $0x78] sm:$0xff]
    %s290 = scalar_lea.vmem %s4, 1
    %v291 = vld [vmem:[%s290] sm:$0x1]
    %v293 = vlaneseq
    %v294 = vshrl.u32 %v293, 7
    %v295 = vsub.s32 0, %v294
    %v296 = vrot.slane %v291, %v295
    %298 = vmatprep.subr.mxu0 0.0
    %299 = vmatpush1.msra.mxu0 %v274
    %300 = vmatprep.subr.mxu0 0.0
    %301 = vmatpush1.msra.mxu0 %v275
    %302 = vmatprep.subr.mxu0 0.0
    %303 = vmatpush1.msra.mxu0 %v276
    %304 = vmatprep.subr.mxu0 0.0
    %305 = vmatpush1.msra.mxu0 %v277
    %306 = vmatprep.subr.mxu0 0.0
    %307 = vmatpush1.msra.mxu0 %v278
    %308 = vmatprep.subr.mxu0 0.0
    %309 = vmatpush1.msra.mxu0 %v279
    %310 = vmatprep.subr.mxu0 0.0
    %311 = vmatpush1.msra.mxu0 %v280
    %312 = vmatprep.subr.mxu0 0.0
    %313 = vmatpush1.msra.mxu0 %v281
    %314 = vmatprep.subr.mxu0 0.0
    %315 = vmatpush1.msra.mxu0 %v282
    %316 = vmatprep.subr.mxu0 0.0
    %317 = vmatpush1.msra.mxu0 %v283
    %318 = vmatprep.subr.mxu0 0.0
    %319 = vmatpush1.msra.mxu0 %v284
    %320 = vmatprep.subr.mxu0 0.0
    %321 = vmatpush1.msra.mxu0 %v285
    %322 = vmatprep.subr.mxu0 0.0
    %323 = vmatpush1.msra.mxu0 %v286
    %324 = vmatprep.subr.mxu0 0.0
    %325 = vmatpush1.msra.mxu0 %v287
    %326 = vmatprep.subr.mxu0 0.0
    %327 = vmatpush1.msra.mxu0 %v288
    %328 = vmatprep.subr.mxu0 0.0
    %329 = vmatpush1.msra.mxu0 %v289
    %330 = vmatprep.subr.mxu0 0.0
    %331 = vmatpush1.msra.mxu0 0.0
    %332 = vmatprep.subr.mxu0 0.0
    %333 = vmatpush1.msra.mxu0 0.0
    %334 = vmatprep.subr.mxu0 0.0
    %335 = vmatpush1.msra.mxu0 0.0
    %336 = vmatprep.subr.mxu0 0.0
    %337 = vmatpush1.msra.mxu0 0.0
    %338 = vmatprep.subr.mxu0 0.0
    %339 = vmatpush1.msra.mxu0 0.0
    %340 = vmatprep.subr.mxu0 0.0
    %341 = vmatpush1.msra.mxu0 0.0
    %342 = vmatprep.subr.mxu0 0.0
    %343 = vmatpush1.msra.mxu0 0.0
    %344 = vmatprep.subr.mxu0 0.0
    %345 = vmatpush1.msra.mxu0 0.0
    %346 = vmatprep.subr.mxu0 0.0
    %347 = vmatpush1.msra.mxu0 0.0
    %348 = vmatprep.subr.mxu0 0.0
    %349 = vmatpush1.msra.mxu0 0.0
    %350 = vmatprep.subr.mxu0 0.0
    %351 = vmatpush1.msra.mxu0 0.0
    %352 = vmatprep.subr.mxu0 0.0
    %353 = vmatpush1.msra.mxu0 0.0
    %354 = vmatprep.subr.mxu0 0.0
    %355 = vmatpush1.msra.mxu0 0.0
    %356 = vmatprep.subr.mxu0 0.0
    %357 = vmatpush1.msra.mxu0 0.0
    %358 = vmatprep.subr.mxu0 0.0
    %359 = vmatpush1.msra.mxu0 0.0
    %360 = vmatprep.subr.mxu0 0.0
    %361 = vmatpush1.msra.mxu0 0.0
    %362 = vmatprep.mubr.f32.mxu0 0.0
    %363 = vmatmul.mubr.f32.gmra.mrb[0].mxu0 %v272
    %v364 = vpop.f32.mrb[0].mxu0
    %v365 = vadd.f32 %v296, %v364
    %v366 = vpop.f32.mrb[0].mxu0
    %367 = vdwg.mxu0
    %v368 = vmax.f32 %v365, 0.0
    %369 = vst [vmem:[#allocation2] sm:$0xff] %v368
    %v370 = vld [vmem:[#allocation2] sm:$0xff]
    %v371 = vld [vmem:[#allocation9] sm:$0xff]
    %v372 = vld [vmem:[#allocation9 + $0x8] sm:$0xff]
    %v373 = vld [vmem:[#allocation9 + $0x10] sm:$0xff]
    %v374 = vld [vmem:[#allocation9 + $0x18] sm:$0xff]
    %v375 = vld [vmem:[#allocation9 + $0x20] sm:$0xff]
    %v376 = vld [vmem:[#allocation9 + $0x28] sm:$0xff]
    %v377 = vld [vmem:[#allocation9 + $0x30] sm:$0xff]
    %v378 = vld [vmem:[#allocation9 + $0x38] sm:$0xff]
    %v379 = vld [vmem:[#allocation9 + $0x40] sm:$0xff]
    %v380 = vld [vmem:[#allocation9 + $0x48] sm:$0xff]
    %v381 = vld [vmem:[#allocation9 + $0x50] sm:$0xff]
    %v382 = vld [vmem:[#allocation9 + $0x58] sm:$0xff]
    %v383 = vld [vmem:[#allocation9 + $0x60] sm:$0xff]
    %v384 = vld [vmem:[#allocation9 + $0x68] sm:$0xff]
    %v385 = vld [vmem:[#allocation9 + $0x70] sm:$0xff]
    %v386 = vld [vmem:[#allocation9 + $0x78] sm:$0xff]
    %v387 = vld [vmem:[%s6] sm:$0x1]
    %v389 = vlaneseq
    %v390 = vshrl.u32 %v389, 7
    %v391 = vsub.s32 0, %v390
    %v392 = vrot.slane %v387, %v391
    %394 = vmatprep.subr.mxu0 0.0
    %395 = vmatpush1.msra.mxu0 %v371
    %396 = vmatprep.subr.mxu0 0.0
    %397 = vmatpush1.msra.mxu0 %v372
    %398 = vmatprep.subr.mxu0 0.0
    %399 = vmatpush1.msra.mxu0 %v373
    %400 = vmatprep.subr.mxu0 0.0
    %401 = vmatpush1.msra.mxu0 %v374
    %402 = vmatprep.subr.mxu0 0.0
    %403 = vmatpush1.msra.mxu0 %v375
    %404 = vmatprep.subr.mxu0 0.0
    %405 = vmatpush1.msra.mxu0 %v376
    %406 = vmatprep.subr.mxu0 0.0
    %407 = vmatpush1.msra.mxu0 %v377
    %408 = vmatprep.subr.mxu0 0.0
    %409 = vmatpush1.msra.mxu0 %v378
    %410 = vmatprep.subr.mxu0 0.0
    %411 = vmatpush1.msra.mxu0 %v379
    %412 = vmatprep.subr.mxu0 0.0
    %413 = vmatpush1.msra.mxu0 %v380
    %414 = vmatprep.subr.mxu0 0.0
    %415 = vmatpush1.msra.mxu0 %v381
    %416 = vmatprep.subr.mxu0 0.0
    %417 = vmatpush1.msra.mxu0 %v382
    %418 = vmatprep.subr.mxu0 0.0
    %419 = vmatpush1.msra.mxu0 %v383
    %420 = vmatprep.subr.mxu0 0.0
    %421 = vmatpush1.msra.mxu0 %v384
    %422 = vmatprep.subr.mxu0 0.0
    %423 = vmatpush1.msra.mxu0 %v385
    %424 = vmatprep.subr.mxu0 0.0
    %425 = vmatpush1.msra.mxu0 %v386
    %426 = vmatprep.subr.mxu0 0.0
    %427 = vmatpush1.msra.mxu0 0.0
    %428 = vmatprep.subr.mxu0 0.0
    %429 = vmatpush1.msra.mxu0 0.0
    %430 = vmatprep.subr.mxu0 0.0
    %431 = vmatpush1.msra.mxu0 0.0
    %432 = vmatprep.subr.mxu0 0.0
    %433 = vmatpush1.msra.mxu0 0.0
    %434 = vmatprep.subr.mxu0 0.0
    %435 = vmatpush1.msra.mxu0 0.0
    %436 = vmatprep.subr.mxu0 0.0
    %437 = vmatpush1.msra.mxu0 0.0
    %438 = vmatprep.subr.mxu0 0.0
    %439 = vmatpush1.msra.mxu0 0.0
    %440 = vmatprep.subr.mxu0 0.0
    %441 = vmatpush1.msra.mxu0 0.0
    %442 = vmatprep.subr.mxu0 0.0
    %443 = vmatpush1.msra.mxu0 0.0
    %444 = vmatprep.subr.mxu0 0.0
    %445 = vmatpush1.msra.mxu0 0.0
    %446 = vmatprep.subr.mxu0 0.0
    %447 = vmatpush1.msra.mxu0 0.0
    %448 = vmatprep.subr.mxu0 0.0
    %449 = vmatpush1.msra.mxu0 0.0
    %450 = vmatprep.subr.mxu0 0.0
    %451 = vmatpush1.msra.mxu0 0.0
    %452 = vmatprep.subr.mxu0 0.0
    %453 = vmatpush1.msra.mxu0 0.0
    %454 = vmatprep.subr.mxu0 0.0
    %455 = vmatpush1.msra.mxu0 0.0
    %456 = vmatprep.subr.mxu0 0.0
    %457 = vmatpush1.msra.mxu0 0.0
    %458 = vmatprep.mubr.f32.mxu0 0.0
    %459 = vmatmul.mubr.f32.gmra.mrb[0].mxu0 %v370
    %v460 = vpop.f32.mrb[0].mxu0
    %v461 = vadd.f32 %v392, %v460
    %v462 = vpop.f32.mrb[0].mxu0
    %463 = vdwg.mxu0
    %464 = vst [vmem:[#allocation11] sm:$0xff] %v461
    // Predicated region
    $region46: #{tpu_custom_call.1} parent=1 // pred_check
      _
    $region47: #{tpu_custom_call.1} parent=1 // pred_check_branch
      %466 = sbr.rel (0) target = $region49
    $region48: #{tpu_custom_call.1} parent=1 // pred_region
      %s468 = ssub.s32 128, 128
      %469 = vsyncadd [#allocation5], %s468
      %s471 = sshll.u32 [#allocation11], 4
      %s472 = int_to_ptr.vmem [resolvable:$true] %s471
      %474 = dma.vmem_to_hbm [thread:$0]  %s472, 128, %s7, [#allocation5]
    $region49: #{tpu_custom_call.1} parent=1 // pred_fallthru
      _
    // Predicated region
    $region50: #{tpu_custom_call.1} parent=1 // pred_check
      _
    $region51: #{tpu_custom_call.1} parent=1 // pred_check_branch
      %476 = sbr.rel (0) target = $region53
    $region52: #{tpu_custom_call.1} parent=1 // pred_region
      %477 = dma.done [#allocation5], 128
    $region53: #{tpu_custom_call.1} parent=1 // pred_fallthru
      _
    %478 = vsyncpa [#allocation4], 1
    %479 = vsyncpa [#allocation7], 1
    %480 = vsyncpa [#allocation10], 1
    %481 = vsyncpa [#allocation5], 1

</llo_original>
